<compile_context>
chip_gen: v6e
topology: v6e:2x2x1
jax: 0.10.0
libtpu: 0.0.40
codegen_flags: <defaults>
</compile_context>

<pallas_src>
import math

import jax
import jax.numpy as jnp
from jax.experimental import pallas as pl
from jax.experimental.pallas import tpu as pltpu


def _head_attention_kernel(x_ref, wqkv_ref, bqkv_ref, attn_ref, probs_ref):
    # x_ref:    (B*S, E)  all tokens, batch flattened (single invocation, VMEM-resident)
    # wqkv_ref: (E, 3H)   fused Q|K|V weights; Q columns pre-scaled by 1/sqrt(H)
    # bqkv_ref: (1, 3H)   fused biases; Q part pre-scaled by 1/sqrt(H)
    # attn_ref: (B, S, H) output attention_weights
    # probs_ref:(B, S, S) output softmax probabilities
    B, S, H = attn_ref.shape

    x = x_ref[...]  # f32, no redundant cast

    # One fused MXU pass: (B*S, E) x (E, 3H).
    # TODO(synk): at realistic sizes (S>=512, E>=1024) feed bf16 x/weights to the MXU
    # (keep preferred_element_type=f32) for the big v6e/v7x MXU throughput win.
    qkv = jnp.dot(x, wqkv_ref[...], preferred_element_type=jnp.float32) + bqkv_ref[...]
    qkv = qkv.reshape(B, S, 3 * H)                      # layout-preserving leading-dim split

    q = qkv[:, :, :H]            # already carries the 1/sqrt(H) score scale
    k = qkv[:, :, H:2 * H]
    v = qkv[:, :, 2 * H:]

    # scores[b] = q[b] @ k[b]^T — contract last dims directly (no materialized transpose)
    scores = jnp.einsum("bqh,bkh->bqk", q, k,
                        preferred_element_type=jnp.float32)      # (B, S, S)

    # numerically-stable softmax over the key dim
    m = jnp.max(scores, axis=-1, keepdims=True)
    e = jnp.exp(scores - m)
    denom = jnp.sum(e, axis=-1, keepdims=True)
    # exact reciprocal (approx=True would push errors past the 1e-5 check at no gain here)
    probs = e * pl.reciprocal(denom)                             # (B, S, S)

    attn = jnp.einsum("bqk,bkh->bqh", probs, v,
                      preferred_element_type=jnp.float32)        # (B, S, H)

    attn_ref[...] = attn.astype(attn_ref.dtype)
    # TODO(synk): at scale, emit probs as bf16 (or not at all) and tile S flash-style —
    # the O(B*S^2) f32 probs writeback is the HBM-bound term, and a full (S,S) f32 block
    # exceeds v7x's 64 MiB VMEM well before it would on v5e/v6e. Also present outputs as
    # lane-dense (last dim a large multiple of 128) slabs for unmasked vst.
    probs_ref[...] = probs.astype(probs_ref.dtype)


def head_attention(x, wq, bq, wk, bk, wv, bv):
    """x: (B, S, E); weights: (E, H) == torch weight (H, E) transposed; biases: (H,).
    Returns (attention_weights (B,S,H), probs (B,S,S)) exactly as the PyTorch module."""
    B, S, E = x.shape
    H = wq.shape[1]
    scale = 1.0 / math.sqrt(H)   # scale from the TRUE head dim, not the fused 3H width

    # Fuse Q|K|V and fold the 1/sqrt(H) score scale into the Q columns:
    #   (x@(wq*s) + bq*s) @ (x@wk + bk)^T  ==  ((x@wq + bq) @ (x@wk + bk)^T) * s
    wqkv = jnp.concatenate([wq * scale, wk, wv], axis=1)          # (E, 3H)
    bqkv = jnp.concatenate([bq * scale, bk, bv]).reshape(1, 3 * H)

    x2d = x.reshape(B * S, E)   # free wrapper-side reshape; kernel does one 2D matmul

    attn, probs = pl.pallas_call(
        _head_attention_kernel,
        # No grid: the whole problem is one invocation, fully VMEM-resident.
        # TODO(synk): when B/S grow, reintroduce a 'parallel' leading grid axis so the
        # two v7x TensorCores each take half the batch, and tile the q/k dimensions.
        in_specs=[
            pl.BlockSpec(memory_space=pltpu.MemorySpace.VMEM),   # x (B*S, E)
            pl.BlockSpec(memory_space=pltpu.MemorySpace.VMEM),   # fused wqkv (E, 3H)
            pl.BlockSpec(memory_space=pltpu.MemorySpace.VMEM),   # fused bqkv (1, 3H)
        ],
        out_specs=[
            pl.BlockSpec(memory_space=pltpu.MemorySpace.VMEM),   # attn (B, S, H)
            pl.BlockSpec(memory_space=pltpu.MemorySpace.VMEM),   # probs (B, S, S)
        ],
        out_shape=[
            jax.ShapeDtypeStruct((B, S, H), jnp.float32),
            jax.ShapeDtypeStruct((B, S, S), jnp.float32),
        ],
    )(x2d, wqkv, bqkv)
    return attn, probs


def _ref_head_attention(x, wq, bq, wk, bk, wv, bv):
    q = x @ wq + bq
    k = x @ wk + bk
    v = x @ wv + bv
    s = jnp.einsum("bse,bte->bst", q, k) / math.sqrt(wq.shape[1])
    p = jax.nn.softmax(s, axis=-1)
    return jnp.einsum("bst,bth->bsh", p, v), p


if __name__ == "__main__":
    # Small shapes consistent with the module: batch=2, seq=8, embed_dim=32, head_dim=16
    B, S, E, H = 2, 8, 32, 16

    key = jax.random.PRNGKey(0)
    kx, kwq, kbq, kwk, kbk, kwv, kbv = jax.random.split(key, 7)

    x = jax.random.normal(kx, (B, S, E), dtype=jnp.float32)

    # Deterministic parameter init (torch Linear default: U(-1/sqrt(E), 1/sqrt(E))).
    bound = 1.0 / math.sqrt(E)
    # Stored as (E, H) == torch weight (H, E) transposed, so y = x @ W + b.
    wq = jax.random.uniform(kwq, (E, H), minval=-bound, maxval=bound, dtype=jnp.float32)
    wk = jax.random.uniform(kwk, (E, H), minval=-bound, maxval=bound, dtype=jnp.float32)
    wv = jax.random.uniform(kwv, (E, H), minval=-bound, maxval=bound, dtype=jnp.float32)
    bq = jax.random.uniform(kbq, (H,), minval=-bound, maxval=bound, dtype=jnp.float32)
    bk = jax.random.uniform(kbk, (H,), minval=-bound, maxval=bound, dtype=jnp.float32)
    bv = jax.random.uniform(kbv, (H,), minval=-bound, maxval=bound, dtype=jnp.float32)

    # TODO(synk): nn.Dropout is defined in __init__ but never applied in forward, so no dropout here.
    attn, probs = head_attention(x, wq, bq, wk, bk, wv, bv)
    jax.block_until_ready((attn, probs))

    ref_attn, ref_probs = _ref_head_attention(x, wq, bq, wk, bk, wv, bv)
    assert jnp.allclose(attn, ref_attn, atol=1e-5, rtol=1e-5)
    assert jnp.allclose(probs, ref_probs, atol=1e-5, rtol=1e-5)

    print("KERNEL_OK")
</pallas_src>

<mosaic_0001>
module attributes {stable_mosaic.version = 11 : i64} {
  func.func @_head_attention_kernel(%arg0: memref<16x32xf32, #tpu.memory_space<vmem>>, %arg1: memref<32x48xf32, #tpu.memory_space<vmem>>, %arg2: memref<1x48xf32, #tpu.memory_space<vmem>>, %arg3: memref<2x8x16xf32, #tpu.memory_space<vmem>>, %arg4: memref<2x8x8xf32, #tpu.memory_space<vmem>>) attributes {dimension_semantics = [], scalar_prefetch = 0 : i64, scratch_operands = 0 : i64, tpu.core_type = #tpu.core_type<tc>} {
    %c0 = arith.constant 0 : index
    %c0_0 = arith.constant 0 : index
    %0 = vector.load %arg0[%c0, %c0_0] : memref<16x32xf32, #tpu.memory_space<vmem>>, vector<16x32xf32>
    %c0_1 = arith.constant 0 : index
    %c0_2 = arith.constant 0 : index
    %1 = vector.load %arg1[%c0_1, %c0_2] : memref<32x48xf32, #tpu.memory_space<vmem>>, vector<32x48xf32>
    %cst = arith.constant dense<0.000000e+00> : vector<16x48xf32>
    %2 = tpu.matmul %0, %1, %cst {dimension_numbers = #tpu.dot_dimension_numbers<[1], [0], [0], [1], [0, 0, 1, 1], [], []>} : vector<16x32xf32>, vector<32x48xf32>, vector<16x48xf32> -> vector<16x48xf32>
    %c0_3 = arith.constant 0 : index
    %c0_4 = arith.constant 0 : index
    %3 = vector.load %arg2[%c0_3, %c0_4] : memref<1x48xf32, #tpu.memory_space<vmem>>, vector<1x48xf32>
    %4 = vector.broadcast %3 : vector<1x48xf32> to vector<16x48xf32>
    %5 = arith.addf %2, %4 : vector<16x48xf32>
    %6 = vector.shape_cast %5 : vector<16x48xf32> to vector<2x8x48xf32>
    %7 = vector.extract_strided_slice %6 {offsets = [0, 0, 0], sizes = [2, 8, 16], strides = [1, 1, 1]} : vector<2x8x48xf32> to vector<2x8x16xf32>
    %8 = vector.extract_strided_slice %6 {offsets = [0, 0, 16], sizes = [2, 8, 16], strides = [1, 1, 1]} : vector<2x8x48xf32> to vector<2x8x16xf32>
    %9 = vector.extract_strided_slice %6 {offsets = [0, 0, 32], sizes = [2, 8, 16], strides = [1, 1, 1]} : vector<2x8x48xf32> to vector<2x8x16xf32>
    "tpu.trace_start"() <{level = 10 : i32, message = "bqh,bkh->bqk"}> : () -> ()
    %cst_5 = arith.constant dense<0.000000e+00> : vector<2x8x8xf32>
    %10 = tpu.matmul %7, %8, %cst_5 {dimension_numbers = #tpu.dot_dimension_numbers<[2], [2], [1], [1], [0, 0, 0, 1, 1, 1], [0], [0]>} : vector<2x8x16xf32>, vector<2x8x16xf32>, vector<2x8x8xf32> -> vector<2x8x8xf32>
    "tpu.trace_stop"() : () -> ()
    %cst_6 = arith.constant dense<0xFF800000> : vector<2x8xf32>
    %11 = vector.multi_reduction <maximumf>, %10, %cst_6 [2] : vector<2x8x8xf32> to vector<2x8xf32>
    %12 = vector.shape_cast %11 : vector<2x8xf32> to vector<2x8x1xf32>
    %13 = vector.broadcast %12 : vector<2x8x1xf32> to vector<2x8x8xf32>
    %14 = arith.subf %10, %13 : vector<2x8x8xf32>
    %15 = math.exp %14 : vector<2x8x8xf32>
    %cst_7 = arith.constant dense<0.000000e+00> : vector<2x8xf32>
    %16 = vector.multi_reduction <add>, %15, %cst_7 [2] : vector<2x8x8xf32> to vector<2x8xf32>
    %17 = vector.shape_cast %16 : vector<2x8xf32> to vector<2x8x1xf32>
    %18 = tpu.reciprocal %17 : vector<2x8x1xf32> -> vector<2x8x1xf32>
    %19 = vector.broadcast %18 : vector<2x8x1xf32> to vector<2x8x8xf32>
    %20 = arith.mulf %15, %19 : vector<2x8x8xf32>
    "tpu.trace_start"() <{level = 10 : i32, message = "bqk,bkh->bqh"}> : () -> ()
    %cst_8 = arith.constant dense<0.000000e+00> : vector<2x8x16xf32>
    %21 = tpu.matmul %20, %9, %cst_8 {dimension_numbers = #tpu.dot_dimension_numbers<[2], [1], [1], [2], [0, 0, 0, 1, 1, 2], [0], [0]>} : vector<2x8x8xf32>, vector<2x8x16xf32>, vector<2x8x16xf32> -> vector<2x8x16xf32>
    "tpu.trace_stop"() : () -> ()
    %c0_9 = arith.constant 0 : index
    %c0_10 = arith.constant 0 : index
    %c0_11 = arith.constant 0 : index
    %22 = vector.load %arg3[%c0_9, %c0_10, %c0_11] : memref<2x8x16xf32, #tpu.memory_space<vmem>>, vector<2x8x16xf32>
    tpu.vector_store %arg3[%c0_9, %c0_10, %c0_11], %21 {strides = array<i32>} : memref<2x8x16xf32, #tpu.memory_space<vmem>>, vector<2x8x16xf32>,
    %c0_12 = arith.constant 0 : index
    %c0_13 = arith.constant 0 : index
    %c0_14 = arith.constant 0 : index
    %23 = vector.load %arg4[%c0_12, %c0_13, %c0_14] : memref<2x8x8xf32, #tpu.memory_space<vmem>>, vector<2x8x8xf32>
    tpu.vector_store %arg4[%c0_12, %c0_13, %c0_14], %20 {strides = array<i32>} : memref<2x8x8xf32, #tpu.memory_space<vmem>>, vector<2x8x8xf32>,
    return
  }
}

</mosaic_0001>

<llo_original>
// kernel: tpu_custom_call.1
$region0: #{tpu_custom_call.1}
  #allocation0 [shape = 'u32[]', space=smem, size = 0x4, offset = 0x4, fixed_abs, tag = 'smem constant byte address 0x4 - core index']
  #allocation1 [shape = 'u32[144,128]{1,0:T(1,128)}', space=vmem, size = 0x12000, scoped, tag = 'internal scratch']
  %s0 = inlined_call_operand.hbm [shape: f32[16,32], index: 0, kind: input, shape index: {}]
  %s1 = inlined_call_operand.hbm [shape: f32[32,48], index: 1, kind: input, shape index: {}]
  %s2 = inlined_call_operand.vmem [shape: f32[1,48], index: 2, kind: input, shape index: {}]
  %s3 = inlined_call_operand.hbm [shape: f32[2,8,16], index: 3, kind: output, shape index: {0}]
  %s4 = inlined_call_operand.hbm [shape: f32[2,8,8], index: 4, kind: output, shape index: {1}]
  %5 = xla_tuple %s3, %s4
  %s6 = sld [smem:[#allocation0]]
  $region38: #{tpu_custom_call.1} parent=0
    _
  %s8 = ssub.s32 1, %s6
  %s9 = scalar_select 0, %s8, %s6
  $region1: #{tpu_custom_call.1} parent=0
    #allocation2 [shape = 'u8[8192]{0}', space=vmem, size = 0x2000, scoped, tag = 'input window, operand 0, single buffered']
    #allocation3 [shape = 's32[1]{0}', space=sflag, size = 0x4, scoped, tag = 'scoped memory for tpu_custom_call.1']
    #allocation4 [shape = 's32[1]{0}', space=sflag, size = 0x4, scoped, tag = 'scoped memory for tpu_custom_call.1']
    #allocation5 [shape = 'u8[16384]{0}', space=vmem, size = 0x4000, scoped, tag = 'input window, operand 1, single buffered']
    #allocation6 [shape = 's32[1]{0}', space=sflag, size = 0x4, scoped, tag = 'scoped memory for tpu_custom_call.1']
    #allocation7 [shape = 'u8[8192]{0}', space=vmem, size = 0x2000, scoped, tag = 'output window, operand 0, single buffered']
    #allocation8 [shape = 'u8[8192]{0}', space=vmem, size = 0x2000, scoped, tag = 'output window, operand 1, single buffered']
    #allocation9 [shape = 's32[1]{0}', space=sflag, size = 0x4, scoped, tag = 'scoped memory for tpu_custom_call.1']
    %10 = vsyncpa [#allocation3], 0
    %11 = vsyncpa [#allocation6], 0
    %12 = vsyncpa [#allocation4], 0
    %13 = vsyncpa [#allocation9], 0
    // Predicated region
    $region2: #{tpu_custom_call.1} parent=1 // pred_check
      _
    $region3: #{tpu_custom_call.1} parent=1 // pred_check_branch
      %15 = sbr.rel (0) target = $region5
    $region4: #{tpu_custom_call.1} parent=1 // pred_region
      %s17 = ssub.s32 256, 256
      %18 = vsyncadd [#allocation3], %s17
      %s19 = sshll.u32 [#allocation2], 4
      %s20 = int_to_ptr.vmem [resolvable:$true] %s19
      %25 = dma.hbm_to_vmem [thread:$0]  %s0, 256, %s20, [#allocation3], 128, 128, 8
    $region5: #{tpu_custom_call.1} parent=1 // pred_fallthru
      _
    // Predicated region
    $region6: #{tpu_custom_call.1} parent=1 // pred_check
      _
    $region7: #{tpu_custom_call.1} parent=1 // pred_check_branch
      %27 = sbr.rel (0) target = $region9
    $region8: #{tpu_custom_call.1} parent=1 // pred_region
      %s29 = ssub.s32 512, 512
      %30 = vsyncadd [#allocation6], %s29
      %s31 = sshll.u32 [#allocation5], 4
      %s32 = int_to_ptr.vmem [resolvable:$true] %s31
      %37 = dma.hbm_to_vmem [thread:$0]  %s1, 512, %s32, [#allocation6], 128, 128, 8
    $region9: #{tpu_custom_call.1} parent=1 // pred_fallthru
      _
    // Predicated region
    $region10: #{tpu_custom_call.1} parent=1 // pred_check
      _
    $region11: #{tpu_custom_call.1} parent=1 // pred_check_branch
      %39 = sbr.rel (0) target = $region13
    $region12: #{tpu_custom_call.1} parent=1 // pred_region
      _
    $region13: #{tpu_custom_call.1} parent=1 // pred_fallthru
      _
    // Predicated region
    $region14: #{tpu_custom_call.1} parent=1 // pred_check
      _
    $region15: #{tpu_custom_call.1} parent=1 // pred_check_branch
      %41 = sbr.rel (0) target = $region17
    $region16: #{tpu_custom_call.1} parent=1 // pred_region
      %42 = dma.done [#allocation3], 256
    $region17: #{tpu_custom_call.1} parent=1 // pred_fallthru
      _
    // Predicated region
    $region18: #{tpu_custom_call.1} parent=1 // pred_check
      _
    $region19: #{tpu_custom_call.1} parent=1 // pred_check_branch
      %44 = sbr.rel (0) target = $region21
    $region20: #{tpu_custom_call.1} parent=1 // pred_region
      %45 = dma.done [#allocation6], 512
    $region21: #{tpu_custom_call.1} parent=1 // pred_fallthru
      _
    %v46 = vld [vmem:[#allocation2] sm:$0xff]
    %v47 = vld [vmem:[#allocation2 + $0x8] sm:$0xff]
    %v48 = vld [vmem:[#allocation5] sm:$0xff]
    %v49 = vld [vmem:[#allocation5 + $0x8] sm:$0xff]
    %v50 = vld [vmem:[#allocation5 + $0x10] sm:$0xff]
    %v51 = vld [vmem:[#allocation5 + $0x18] sm:$0xff]
    %v52 = vld [vmem:[%s2] sm:$0x1]
    %v54 = vlaneseq
    %v55 = vshrl.u32 %v54, 7
    %v56 = vsub.s32 0, %v55
    %v57 = vrot.slane %v52, %v56
    %vm59 = vcmask 261120
    %v61 = vsel %vm59, %v46, 0
    %v64 = vsel %vm59, %v47, 0
    %66 = vmatprep.subr.mxu0 0.0
    %67 = vmatpush1.msra.mxu0 0.0
    %68 = vmatprep.subr.mxu0 0.0
    %69 = vmatpush1.msra.mxu0 0.0
    %70 = vmatprep.subr.mxu0 0.0
    %71 = vmatpush1.msra.mxu0 0.0
    %72 = vmatprep.subr.mxu0 0.0
    %73 = vmatpush1.msra.mxu0 0.0
    %74 = vmatprep.subr.mxu0 0.0
    %75 = vmatpush1.msra.mxu0 0.0
    %76 = vmatprep.subr.mxu0 0.0
    %77 = vmatpush1.msra.mxu0 0.0
    %78 = vmatprep.subr.mxu0 0.0
    %79 = vmatpush1.msra.mxu0 0.0
    %80 = vmatprep.subr.mxu0 0.0
    %81 = vmatpush1.msra.mxu0 0.0
    %82 = vmatprep.subr.mxu0 0.0
    %83 = vmatpush1.msra.mxu0 0.0
    %84 = vmatprep.subr.mxu0 0.0
    %85 = vmatpush1.msra.mxu0 0.0
    %86 = vmatprep.subr.mxu0 0.0
    %87 = vmatpush1.msra.mxu0 0.0
    %88 = vmatprep.subr.mxu0 0.0
    %89 = vmatpush1.msra.mxu0 0.0
    %90 = vmatprep.subr.mxu0 0.0
    %91 = vmatpush1.msra.mxu0 %v51
    %92 = vmatprep.subr.mxu0 0.0
    %93 = vmatpush1.msra.mxu0 %v50
    %94 = vmatprep.subr.mxu0 0.0
    %95 = vmatpush1.msra.mxu0 %v49
    %96 = vmatprep.subr.mxu0 0.0
    %97 = vmatpush1.msra.mxu0 %v48
    %98 = vmatprep.subr.mxu0 0.0
    %99 = vmatpush2.msra.mxu0 0.0
    %100 = vmatprep.subr.mxu0 0.0
    %101 = vmatpush2.msra.mxu0 0.0
    %102 = vmatprep.subr.mxu0 0.0
    %103 = vmatpush2.msra.mxu0 0.0
    %104 = vmatprep.subr.mxu0 0.0
    %105 = vmatpush2.msra.mxu0 0.0
    %106 = vmatprep.subr.mxu0 0.0
    %107 = vmatpush2.msra.mxu0 0.0
    %108 = vmatprep.subr.mxu0 0.0
    %109 = vmatpush2.msra.mxu0 0.0
    %110 = vmatprep.subr.mxu0 0.0
    %111 = vmatpush2.msra.mxu0 0.0
    %112 = vmatprep.subr.mxu0 0.0
    %113 = vmatpush2.msra.mxu0 0.0
    %114 = vmatprep.subr.mxu0 0.0
    %115 = vmatpush2.msra.mxu0 0.0
    %116 = vmatprep.subr.mxu0 0.0
    %117 = vmatpush2.msra.mxu0 0.0
    %118 = vmatprep.subr.mxu0 0.0
    %119 = vmatpush2.msra.mxu0 0.0
    %120 = vmatprep.subr.mxu0 0.0
    %121 = vmatpush2.msra.mxu0 0.0
    %122 = vmatprep.subr.mxu0 0.0
    %123 = vmatpush2.msra.mxu0 0.0
    %124 = vmatprep.subr.mxu0 0.0
    %125 = vmatpush2.msra.mxu0 0.0
    %126 = vmatprep.subr.mxu0 0.0
    %127 = vmatpush2.msra.mxu0 0.0
    %128 = vmatprep.subr.mxu0 0.0
    %129 = vmatpush2.msra.mxu0 0.0
    %130 = vmatprep.mubr.f32.mxu0 0.0
    %131 = vmatmul.mubr.f32.gmra.mxu0 %v61
    %v132 = vpop.f32.mrf.mxu0
    %v133 = vadd.f32 %v57, %v132
    %v134 = vpop.f32.mrf.mxu0
    %135 = vmatprep.mubr.f32.mxu0 0.0
    %136 = vmatmul.mubr.f32.gmra.mxu0 %v64
    %v137 = vpop.f32.mrf.mxu0
    %v138 = vadd.f32 %v57, %v137
    %v139 = vpop.f32.mrf.mxu0
    %140 = vdwg.mxu0
    %142 = vrot.lane.b32.xlu0 %v133, 112
    %v143 = vpop.permute.xlu0 %142
    %vm144 = vcmask 130048
    %v145 = vsel %vm144, %v133, 0
    %v147 = vsel %vm144, %v143, 0
    %149 = vmatprep.subr.mxu0 0.0
    %150 = vmatpush1.xpose.msra.mxu0 0.0
    %151 = vmatprep.subr.mxu0 0.0
    %152 = vmatpush1.xpose.msra.mxu0 0.0
    %153 = vmatprep.subr.mxu0 0.0
    %154 = vmatpush1.xpose.msra.mxu0 0.0
    %155 = vmatprep.subr.mxu0 0.0
    %156 = vmatpush1.xpose.msra.mxu0 0.0
    %157 = vmatprep.subr.mxu0 0.0
    %158 = vmatpush1.xpose.msra.mxu0 0.0
    %159 = vmatprep.subr.mxu0 0.0
    %160 = vmatpush1.xpose.msra.mxu0 0.0
    %161 = vmatprep.subr.mxu0 0.0
    %162 = vmatpush1.xpose.msra.mxu0 0.0
    %163 = vmatprep.subr.mxu0 0.0
    %164 = vmatpush1.xpose.msra.mxu0 0.0
    %165 = vmatprep.subr.mxu0 0.0
    %166 = vmatpush1.xpose.msra.mxu0 0.0
    %167 = vmatprep.subr.mxu0 0.0
    %168 = vmatpush1.xpose.msra.mxu0 0.0
    %169 = vmatprep.subr.mxu0 0.0
    %170 = vmatpush1.xpose.msra.mxu0 0.0
    %171 = vmatprep.subr.mxu0 0.0
    %172 = vmatpush1.xpose.msra.mxu0 0.0
    %173 = vmatprep.subr.mxu0 0.0
    %174 = vmatpush1.xpose.msra.mxu0 0.0
    %175 = vmatprep.subr.mxu0 0.0
    %176 = vmatpush1.xpose.msra.mxu0 0.0
    %177 = vmatprep.subr.mxu0 0.0
    %178 = vmatpush1.xpose.msra.mxu0 0.0
    %179 = vmatprep.subr.mxu0 0.0
    %180 = vmatpush1.xpose.msra.mxu0 %v147
    %181 = vmatprep.subr.mxu0 0.0
    %182 = vmatpush2.xpose.msra.mxu0 0.0
    %183 = vmatprep.subr.mxu0 0.0
    %184 = vmatpush2.xpose.msra.mxu0 0.0
    %185 = vmatprep.subr.mxu0 0.0
    %186 = vmatpush2.xpose.msra.mxu0 0.0
    %187 = vmatprep.subr.mxu0 0.0
    %188 = vmatpush2.xpose.msra.mxu0 0.0
    %189 = vmatprep.subr.mxu0 0.0
    %190 = vmatpush2.xpose.msra.mxu0 0.0
    %191 = vmatprep.subr.mxu0 0.0
    %192 = vmatpush2.xpose.msra.mxu0 0.0
    %193 = vmatprep.subr.mxu0 0.0
    %194 = vmatpush2.xpose.msra.mxu0 0.0
    %195 = vmatprep.subr.mxu0 0.0
    %196 = vmatpush2.xpose.msra.mxu0 0.0
    %197 = vmatprep.subr.mxu0 0.0
    %198 = vmatpush2.xpose.msra.mxu0 0.0
    %199 = vmatprep.subr.mxu0 0.0
    %200 = vmatpush2.xpose.msra.mxu0 0.0
    %201 = vmatprep.subr.mxu0 0.0
    %202 = vmatpush2.xpose.msra.mxu0 0.0
    %203 = vmatprep.subr.mxu0 0.0
    %204 = vmatpush2.xpose.msra.mxu0 0.0
    %205 = vmatprep.subr.mxu0 0.0
    %206 = vmatpush2.xpose.msra.mxu0 0.0
    %207 = vmatprep.subr.mxu0 0.0
    %208 = vmatpush2.xpose.msra.mxu0 0.0
    %209 = vmatprep.subr.mxu0 0.0
    %210 = vmatpush2.xpose.msra.mxu0 0.0
    %211 = vmatprep.subr.mxu0 0.0
    %212 = vmatpush2.xpose.msra.mxu0 0.0
    %213 = vmatprep.mubr.f32.mxu0 0.0
    %214 = vmatmul.mubr.f32.gmra.mxu0 %v145
    %v215 = vpop.f32.mrf.mxu0
    %v216 = vadd.f32 0.0, %v215
    %v217 = vpop.f32.mrf.mxu0
    %218 = vdwg.mxu0
    %220 = vrot.lane.b32.xlu0 %v138, 112
    %v221 = vpop.permute.xlu0 %220
    %v222 = vsel %vm144, %v138, 0
    %v224 = vsel %vm144, %v221, 0
    %226 = vmatprep.subr.mxu0 0.0
    %227 = vmatpush1.xpose.msra.mxu0 0.0
    %228 = vmatprep.subr.mxu0 0.0
    %229 = vmatpush1.xpose.msra.mxu0 0.0
    %230 = vmatprep.subr.mxu0 0.0
    %231 = vmatpush1.xpose.msra.mxu0 0.0
    %232 = vmatprep.subr.mxu0 0.0
    %233 = vmatpush1.xpose.msra.mxu0 0.0
    %234 = vmatprep.subr.mxu0 0.0
    %235 = vmatpush1.xpose.msra.mxu0 0.0
    %236 = vmatprep.subr.mxu0 0.0
    %237 = vmatpush1.xpose.msra.mxu0 0.0
    %238 = vmatprep.subr.mxu0 0.0
    %239 = vmatpush1.xpose.msra.mxu0 0.0
    %240 = vmatprep.subr.mxu0 0.0
    %241 = vmatpush1.xpose.msra.mxu0 0.0
    %242 = vmatprep.subr.mxu0 0.0
    %243 = vmatpush1.xpose.msra.mxu0 0.0
    %244 = vmatprep.subr.mxu0 0.0
    %245 = vmatpush1.xpose.msra.mxu0 0.0
    %246 = vmatprep.subr.mxu0 0.0
    %247 = vmatpush1.xpose.msra.mxu0 0.0
    %248 = vmatprep.subr.mxu0 0.0
    %249 = vmatpush1.xpose.msra.mxu0 0.0
    %250 = vmatprep.subr.mxu0 0.0
    %251 = vmatpush1.xpose.msra.mxu0 0.0
    %252 = vmatprep.subr.mxu0 0.0
    %253 = vmatpush1.xpose.msra.mxu0 0.0
    %254 = vmatprep.subr.mxu0 0.0
    %255 = vmatpush1.xpose.msra.mxu0 0.0
    %256 = vmatprep.subr.mxu0 0.0
    %257 = vmatpush1.xpose.msra.mxu0 %v224
    %258 = vmatprep.subr.mxu0 0.0
    %259 = vmatpush2.xpose.msra.mxu0 0.0
    %260 = vmatprep.subr.mxu0 0.0
    %261 = vmatpush2.xpose.msra.mxu0 0.0
    %262 = vmatprep.subr.mxu0 0.0
    %263 = vmatpush2.xpose.msra.mxu0 0.0
    %264 = vmatprep.subr.mxu0 0.0
    %265 = vmatpush2.xpose.msra.mxu0 0.0
    %266 = vmatprep.subr.mxu0 0.0
    %267 = vmatpush2.xpose.msra.mxu0 0.0
    %268 = vmatprep.subr.mxu0 0.0
    %269 = vmatpush2.xpose.msra.mxu0 0.0
    %270 = vmatprep.subr.mxu0 0.0
    %271 = vmatpush2.xpose.msra.mxu0 0.0
    %272 = vmatprep.subr.mxu0 0.0
    %273 = vmatpush2.xpose.msra.mxu0 0.0
    %274 = vmatprep.subr.mxu0 0.0
    %275 = vmatpush2.xpose.msra.mxu0 0.0
    %276 = vmatprep.subr.mxu0 0.0
    %277 = vmatpush2.xpose.msra.mxu0 0.0
    %278 = vmatprep.subr.mxu0 0.0
    %279 = vmatpush2.xpose.msra.mxu0 0.0
    %280 = vmatprep.subr.mxu0 0.0
    %281 = vmatpush2.xpose.msra.mxu0 0.0
    %282 = vmatprep.subr.mxu0 0.0
    %283 = vmatpush2.xpose.msra.mxu0 0.0
    %284 = vmatprep.subr.mxu0 0.0
    %285 = vmatpush2.xpose.msra.mxu0 0.0
    %286 = vmatprep.subr.mxu0 0.0
    %287 = vmatpush2.xpose.msra.mxu0 0.0
    %288 = vmatprep.subr.mxu0 0.0
    %289 = vmatpush2.xpose.msra.mxu0 0.0
    %290 = vmatprep.mubr.f32.mxu0 0.0
    %291 = vmatmul.mubr.f32.gmra.mxu0 %v222
    %v292 = vpop.f32.mrf.mxu0
    %v293 = vadd.f32 0.0, %v292
    %v294 = vpop.f32.mrf.mxu0
    %295 = vdwg.mxu0
    %vm296 = vcmask 64512
    %v297 = vsel %vm296, %v216, -inf
    %298 = vmax.xlane.f32.xlu0 %v297
    %v299 = vpop.xlane.xlu0 %298
    %v300 = vsel %vm296, %v293, -inf
    %301 = vmax.xlane.f32.xlu0 %v300
    %v302 = vpop.xlane.xlu0 %301
    %v303 = vsub.f32 %v216, %v299
    %v304 = vsub.f32 %v293, %v302
    %v305 = vmul.f32 %v303, 1.442695
    %v306 = vpow.pop %v305
    %v307 = vmul.f32 %v304, 1.442695
    %v308 = vpow.pop %v307
    %v309 = vsel %vm296, %v306, 0.0
    %310 = vadd.xlane.f32.xlu0 %v309
    %v311 = vpop.xlane.xlu0 %310
    %v312 = vsel %vm296, %v308, 0.0
    %313 = vadd.xlane.f32.xlu0 %v312
    %v314 = vpop.xlane.xlu0 %313
    %v315 = vrcp.pop %v311
    %v316 = vrcp.pop %v314
    %v317 = vmul.f32 %v306, %v315
    %v318 = vmul.f32 %v308, %v316
    %319 = vrot.lane.b32.xlu0 %v133, 96
    %v320 = vpop.permute.xlu0 %319
    %v323 = vsel %vm296, %v317, 0
    %325 = vmatprep.subr.mxu0 0.0
    %326 = vmatpush1.msra.mxu0 0.0
    %327 = vmatprep.subr.mxu0 0.0
    %328 = vmatpush1.msra.mxu0 0.0
    %329 = vmatprep.subr.mxu0 0.0
    %330 = vmatpush1.msra.mxu0 0.0
    %331 = vmatprep.subr.mxu0 0.0
    %332 = vmatpush1.msra.mxu0 0.0
    %333 = vmatprep.subr.mxu0 0.0
    %334 = vmatpush1.msra.mxu0 0.0
    %335 = vmatprep.subr.mxu0 0.0
    %336 = vmatpush1.msra.mxu0 0.0
    %337 = vmatprep.subr.mxu0 0.0
    %338 = vmatpush1.msra.mxu0 0.0
    %339 = vmatprep.subr.mxu0 0.0
    %340 = vmatpush1.msra.mxu0 0.0
    %341 = vmatprep.subr.mxu0 0.0
    %342 = vmatpush1.msra.mxu0 0.0
    %343 = vmatprep.subr.mxu0 0.0
    %344 = vmatpush1.msra.mxu0 0.0
    %345 = vmatprep.subr.mxu0 0.0
    %346 = vmatpush1.msra.mxu0 0.0
    %347 = vmatprep.subr.mxu0 0.0
    %348 = vmatpush1.msra.mxu0 0.0
    %349 = vmatprep.subr.mxu0 0.0
    %350 = vmatpush1.msra.mxu0 0.0
    %351 = vmatprep.subr.mxu0 0.0
    %352 = vmatpush1.msra.mxu0 0.0
    %353 = vmatprep.subr.mxu0 0.0
    %354 = vmatpush1.msra.mxu0 0.0
    %355 = vmatprep.subr.mxu0 0.0
    %356 = vmatpush1.msra.mxu0 %v320
    %357 = vmatprep.subr.mxu0 0.0
    %358 = vmatpush2.msra.mxu0 0.0
    %359 = vmatprep.subr.mxu0 0.0
    %360 = vmatpush2.msra.mxu0 0.0
    %361 = vmatprep.subr.mxu0 0.0
    %362 = vmatpush2.msra.mxu0 0.0
    %363 = vmatprep.subr.mxu0 0.0
    %364 = vmatpush2.msra.mxu0 0.0
    %365 = vmatprep.subr.mxu0 0.0
    %366 = vmatpush2.msra.mxu0 0.0
    %367 = vmatprep.subr.mxu0 0.0
    %368 = vmatpush2.msra.mxu0 0.0
    %369 = vmatprep.subr.mxu0 0.0
    %370 = vmatpush2.msra.mxu0 0.0
    %371 = vmatprep.subr.mxu0 0.0
    %372 = vmatpush2.msra.mxu0 0.0
    %373 = vmatprep.subr.mxu0 0.0
    %374 = vmatpush2.msra.mxu0 0.0
    %375 = vmatprep.subr.mxu0 0.0
    %376 = vmatpush2.msra.mxu0 0.0
    %377 = vmatprep.subr.mxu0 0.0
    %378 = vmatpush2.msra.mxu0 0.0
    %379 = vmatprep.subr.mxu0 0.0
    %380 = vmatpush2.msra.mxu0 0.0
    %381 = vmatprep.subr.mxu0 0.0
    %382 = vmatpush2.msra.mxu0 0.0
    %383 = vmatprep.subr.mxu0 0.0
    %384 = vmatpush2.msra.mxu0 0.0
    %385 = vmatprep.subr.mxu0 0.0
    %386 = vmatpush2.msra.mxu0 0.0
    %387 = vmatprep.subr.mxu0 0.0
    %388 = vmatpush2.msra.mxu0 0.0
    %389 = vmatprep.mubr.f32.mxu0 0.0
    %390 = vmatmul.mubr.f32.gmra.mxu0 %v323
    %v391 = vpop.f32.mrf.mxu0
    %v392 = vadd.f32 0.0, %v391
    %v393 = vpop.f32.mrf.mxu0
    %394 = vdwg.mxu0
    %395 = vrot.lane.b32.xlu0 %v138, 96
    %v396 = vpop.permute.xlu0 %395
    %v399 = vsel %vm296, %v318, 0
    %401 = vmatprep.subr.mxu0 0.0
    %402 = vmatpush1.msra.mxu0 0.0
    %403 = vmatprep.subr.mxu0 0.0
    %404 = vmatpush1.msra.mxu0 0.0
    %405 = vmatprep.subr.mxu0 0.0
    %406 = vmatpush1.msra.mxu0 0.0
    %407 = vmatprep.subr.mxu0 0.0
    %408 = vmatpush1.msra.mxu0 0.0
    %409 = vmatprep.subr.mxu0 0.0
    %410 = vmatpush1.msra.mxu0 0.0
    %411 = vmatprep.subr.mxu0 0.0
    %412 = vmatpush1.msra.mxu0 0.0
    %413 = vmatprep.subr.mxu0 0.0
    %414 = vmatpush1.msra.mxu0 0.0
    %415 = vmatprep.subr.mxu0 0.0
    %416 = vmatpush1.msra.mxu0 0.0
    %417 = vmatprep.subr.mxu0 0.0
    %418 = vmatpush1.msra.mxu0 0.0
    %419 = vmatprep.subr.mxu0 0.0
    %420 = vmatpush1.msra.mxu0 0.0
    %421 = vmatprep.subr.mxu0 0.0
    %422 = vmatpush1.msra.mxu0 0.0
    %423 = vmatprep.subr.mxu0 0.0
    %424 = vmatpush1.msra.mxu0 0.0
    %425 = vmatprep.subr.mxu0 0.0
    %426 = vmatpush1.msra.mxu0 0.0
    %427 = vmatprep.subr.mxu0 0.0
    %428 = vmatpush1.msra.mxu0 0.0
    %429 = vmatprep.subr.mxu0 0.0
    %430 = vmatpush1.msra.mxu0 0.0
    %431 = vmatprep.subr.mxu0 0.0
    %432 = vmatpush1.msra.mxu0 %v396
    %433 = vmatprep.subr.mxu0 0.0
    %434 = vmatpush2.msra.mxu0 0.0
    %435 = vmatprep.subr.mxu0 0.0
    %436 = vmatpush2.msra.mxu0 0.0
    %437 = vmatprep.subr.mxu0 0.0
    %438 = vmatpush2.msra.mxu0 0.0
    %439 = vmatprep.subr.mxu0 0.0
    %440 = vmatpush2.msra.mxu0 0.0
    %441 = vmatprep.subr.mxu0 0.0
    %442 = vmatpush2.msra.mxu0 0.0
    %443 = vmatprep.subr.mxu0 0.0
    %444 = vmatpush2.msra.mxu0 0.0
    %445 = vmatprep.subr.mxu0 0.0
    %446 = vmatpush2.msra.mxu0 0.0
    %447 = vmatprep.subr.mxu0 0.0
    %448 = vmatpush2.msra.mxu0 0.0
    %449 = vmatprep.subr.mxu0 0.0
    %450 = vmatpush2.msra.mxu0 0.0
    %451 = vmatprep.subr.mxu0 0.0
    %452 = vmatpush2.msra.mxu0 0.0
    %453 = vmatprep.subr.mxu0 0.0
    %454 = vmatpush2.msra.mxu0 0.0
    %455 = vmatprep.subr.mxu0 0.0
    %456 = vmatpush2.msra.mxu0 0.0
    %457 = vmatprep.subr.mxu0 0.0
    %458 = vmatpush2.msra.mxu0 0.0
    %459 = vmatprep.subr.mxu0 0.0
    %460 = vmatpush2.msra.mxu0 0.0
    %461 = vmatprep.subr.mxu0 0.0
    %462 = vmatpush2.msra.mxu0 0.0
    %463 = vmatprep.subr.mxu0 0.0
    %464 = vmatpush2.msra.mxu0 0.0
    %465 = vmatprep.mubr.f32.mxu0 0.0
    %466 = vmatmul.mubr.f32.gmra.mxu0 %v399
    %v467 = vpop.f32.mrf.mxu0
    %v468 = vadd.f32 0.0, %v467
    %v469 = vpop.f32.mrf.mxu0
    %470 = vdwg.mxu0
    %471 = vst.msk [vmem:[#allocation7] sm:$0xff] %vm144, %v392
    %472 = vst.msk [vmem:[#allocation7 + $0x8] sm:$0xff] %vm144, %v468
    %473 = vst.msk [vmem:[#allocation8] sm:$0xff] %vm296, %v317
    %474 = vst.msk [vmem:[#allocation8 + $0x8] sm:$0xff] %vm296, %v318
    // Predicated region
    $region22: #{tpu_custom_call.1} parent=1 // pred_check
      _
    $region23: #{tpu_custom_call.1} parent=1 // pred_check_branch
      %476 = sbr.rel (0) target = $region25
    $region24: #{tpu_custom_call.1} parent=1 // pred_region
      %s478 = ssub.s32 256, 256
      %479 = vsyncadd [#allocation4], %s478
      %s480 = sshll.u32 [#allocation7], 4
      %s481 = int_to_ptr.vmem [resolvable:$true] %s480
      %486 = dma.vmem_to_hbm [thread:$0]  %s481, 256, %s3, [#allocation4], 128, 128, 8
    $region25: #{tpu_custom_call.1} parent=1 // pred_fallthru
      _
    // Predicated region
    $region26: #{tpu_custom_call.1} parent=1 // pred_check
      _
    $region27: #{tpu_custom_call.1} parent=1 // pred_check_branch
      %488 = sbr.rel (0) target = $region29
    $region28: #{tpu_custom_call.1} parent=1 // pred_region
      %s490 = ssub.s32 256, 256
      %491 = vsyncadd [#allocation9], %s490
      %s492 = sshll.u32 [#allocation8], 4
      %s493 = int_to_ptr.vmem [resolvable:$true] %s492
      %498 = dma.vmem_to_hbm [thread:$0]  %s493, 256, %s4, [#allocation9], 128, 128, 8
    $region29: #{tpu_custom_call.1} parent=1 // pred_fallthru
      _
    // Predicated region
    $region30: #{tpu_custom_call.1} parent=1 // pred_check
      _
    $region31: #{tpu_custom_call.1} parent=1 // pred_check_branch
      %500 = sbr.rel (0) target = $region33
    $region32: #{tpu_custom_call.1} parent=1 // pred_region
      %501 = dma.done [#allocation4], 256
    $region33: #{tpu_custom_call.1} parent=1 // pred_fallthru
      _
    // Predicated region
    $region34: #{tpu_custom_call.1} parent=1 // pred_check
      _
    $region35: #{tpu_custom_call.1} parent=1 // pred_check_branch
      %503 = sbr.rel (0) target = $region37
    $region36: #{tpu_custom_call.1} parent=1 // pred_region
      %504 = dma.done [#allocation9], 256
    $region37: #{tpu_custom_call.1} parent=1 // pred_fallthru
      _
    %505 = vsyncpa [#allocation3], 1
    %506 = vsyncpa [#allocation6], 1
    %507 = vsyncpa [#allocation4], 1
    %508 = vsyncpa [#allocation9], 1

</llo_original>
